<compile_context>
chip_gen: v5e
topology: v5e:2x2
jax: 0.10.0
libtpu: 0.0.40
codegen_flags: <defaults>
</compile_context>

<pallas_src>
import jax
import jax.numpy as jnp
from jax.experimental import pallas as pl
from jax.experimental.pallas import tpu as pltpu

IN_FEATURES = 8
OUT_FEATURES = 128     # Linear(8, 128)
OUT_VALID = 112        # split([64,32,16]) only covers 112 of the 128 columns
TM_MAX = 4096          # batch-tile rows.  Per-step double-buffered VMEM:
                       #   x tile  : (tm, 8)  lane-pads to (tm,128) -> tm*512 B
                       #   out tile: (tm,112) lane-pads to (tm,128) -> tm*512 B
                       # 2 buffers each -> ~tm*2 KiB; tm=4096 -> ~8 MiB, fits
                       # every default scoped-VMEM limit (v5e/v6e/v7x).
SMALL_N_BYPASS = 512   # below this, a plain fused XLA op beats pallas launch


def _fused_relu_linear_kernel(x_ref, w_ref, b_ref, o_ref):
    # relu on the VPU, matmul on the MXU (f32 accumulate), bias add on the VPU.
    xr = jnp.maximum(x_ref[...], 0.0)
    acc = jnp.dot(xr, w_ref[...], preferred_element_type=jnp.float32)
    o_ref[...] = (acc + b_ref[...]).astype(o_ref.dtype)


def _choose_tile(n):
    """Batch-tile rows: full array if small; else multiple-of-8 tiles with
    grid length >= 2 so v7x megacore always has work on both TensorCores."""
    if n <= TM_MAX:
        return n                      # block == full dim, (8,128) rule is met
    half = pl.cdiv(n, 2)
    half8 = pl.cdiv(half, 8) * 8      # round up to a multiple of 8 sublanes
    return min(TM_MAX, half8)


def fused_relu_linear_permuted(x, w_perm, b_perm):
    """x: (N, K) f32, w_perm: (K, P) f32, b_perm: (1, P) f32 -> (N, P) f32."""
    N, K = x.shape
    K2, P = w_perm.shape
    assert K == K2 and b_perm.shape == (1, P)

    tm = _choose_tile(N)
    grid = (pl.cdiv(N, tm),)

    cost = pl.CostEstimate(
        flops=2 * N * K * P,
        transcendentals=0,
        bytes_accessed=4 * (N * K + K * P + P + N * P),
    )

    return pl.pallas_call(
        _fused_relu_linear_kernel,
        out_shape=jax.ShapeDtypeStruct((N, P), jnp.float32),
        grid=grid,
        in_specs=[
            pl.BlockSpec((tm, K), lambda i: (i, 0)),   # streamed over N
            pl.BlockSpec((K, P), lambda i: (0, 0)),    # weight: VMEM-resident
            pl.BlockSpec((1, P), lambda i: (0, 0)),    # bias:   VMEM-resident
        ],
        out_specs=pl.BlockSpec((tm, P), lambda i: (i, 0)),
        compiler_params=pltpu.CompilerParams(
            dimension_semantics=("parallel",),  # megacore-shardable on v7x
        ),
        cost_estimate=cost,
    )(x, w_perm, b_perm)


def make_params(key, in_features=IN_FEATURES, out_features=OUT_FEATURES):
    """Deterministic Linear(8, 128) params, PyTorch-style uniform init."""
    kw, kb = jax.random.split(key)
    bound = 1.0 / jnp.sqrt(jnp.float32(in_features))
    # PyTorch stores weight as (out_features, in_features)
    weight = jax.random.uniform(
        kw, (out_features, in_features), jnp.float32, -bound, bound
    )
    bias = jax.random.uniform(kb, (out_features,), jnp.float32, -bound, bound)
    return weight, bias


def prepare_permuted_params(weight, bias):
    """One-time (init-time) parameter glue: fold split+cat into column order.

    Column order = [64:96] ++ [0:64] ++ [96:112]  -> (8, 112) weight.
    Built from static slices (no gather) so it constant-folds; only the 112
    columns the split actually references are kept, so the kernel emits the
    final (N, 112) result directly.
    """
    w_t = weight.T  # (in_features, out_features) = (8, 128)
    w_perm = jnp.concatenate(
        [w_t[:, 64:96], w_t[:, 0:64], w_t[:, 96:112]], axis=1
    )  # (8, 112)
    b_perm = jnp.concatenate(
        [bias[64:96], bias[0:64], bias[96:112]]
    )[None, :]  # (1, 112)
    return w_perm, b_perm


def model_forward(x, w_perm, b_perm, *, force_pallas=False):
    """Forward pass.  Tiny batches bypass Pallas (launch overhead dominates)."""
    if (not force_pallas) and x.shape[0] < SMALL_N_BYPASS:
        return jnp.maximum(x, 0.0) @ w_perm + b_perm
    return fused_relu_linear_permuted(x, w_perm, b_perm)


def model_forward_ref(x, weight, bias):
    """Pure-JAX reference mirroring the PyTorch module."""
    v1 = jnp.maximum(x, 0.0)
    v2 = v1 @ weight.T + bias
    v3 = v2[:, 0:64]
    v4 = v2[:, 64:96]
    v5 = v2[:, 96:112]
    return jnp.concatenate([v4, v3, v5], axis=1)


if __name__ == "__main__":
    key = jax.random.PRNGKey(0)
    kx, kp, kx2, kx3 = jax.random.split(key, 4)

    weight, bias = make_params(kp)
    # Parameter permutation done ONCE, outside the per-call hot path.
    w_perm, b_perm = prepare_permuted_params(weight, bias)

    # Shape from the original module: x = torch.randn(1, 8).
    # Force the Pallas path so the kernel itself is exercised at this shape.
    x = jax.random.normal(kx, (1, 8), dtype=jnp.float32)
    out = jax.block_until_ready(model_forward(x, w_perm, b_perm, force_pallas=True))
    ref = model_forward_ref(x, weight, bias)
    assert out.shape == (1, OUT_VALID), out.shape
    assert jnp.allclose(out, ref, atol=1e-5, rtol=1e-5), "mismatch (pallas, N=1)"

    # Small-N bypass path must match too.
    out_bp = jax.block_until_ready(model_forward(x, w_perm, b_perm))
    assert jnp.allclose(out_bp, ref, atol=1e-5, rtol=1e-5), "mismatch (bypass)"

    # Larger batch: exercises the tiled, >=2-step parallel grid (8192 / 4096).
    x_big = jax.random.normal(kx2, (8192, 8), dtype=jnp.float32)
    out_big = jax.block_until_ready(model_forward(x_big, w_perm, b_perm))
    ref_big = model_forward_ref(x_big, weight, bias)
    assert out_big.shape == (8192, OUT_VALID), out_big.shape
    assert jnp.allclose(out_big, ref_big, atol=1e-4, rtol=1e-5), \
        "mismatch vs reference (tiled path)"

    # Ragged batch: exercises the partial-final-block path (4100 -> 2x2056).
    x_rag = jax.random.normal(kx3, (4100, 8), dtype=jnp.float32)
    out_rag = jax.block_until_ready(model_forward(x_rag, w_perm, b_perm))
    ref_rag = model_forward_ref(x_rag, weight, bias)
    assert out_rag.shape == (4100, OUT_VALID), out_rag.shape
    assert jnp.allclose(out_rag, ref_rag, atol=1e-4, rtol=1e-5), \
        "mismatch vs reference (ragged path)"

    print("KERNEL_OK")
</pallas_src>

<mosaic_0001>
module attributes {stable_mosaic.version = 11 : i64} {
  func.func @_fused_relu_linear_kernel(%arg0: i32, %arg1: memref<1x8xf32, #tpu.memory_space<vmem>>, %arg2: memref<8x112xf32, #tpu.memory_space<vmem>>, %arg3: memref<1x112xf32, #tpu.memory_space<vmem>>, %arg4: memref<1x112xf32, #tpu.memory_space<vmem>>) attributes {dimension_semantics = [#tpu.dimension_semantics<parallel>], iteration_bounds = array<i64: 1>, scalar_prefetch = 0 : i64, scratch_operands = 0 : i64, tpu.core_type = #tpu.core_type<tc>, window_params = [{transform_indices = @transform_0, window_bounds = array<i64: 1, 8>}, {pipeline_mode = #tpu.pipeline_mode<synchronous>, transform_indices = @transform_1, window_bounds = array<i64: 8, 112>}, {pipeline_mode = #tpu.pipeline_mode<synchronous>, transform_indices = @transform_2, window_bounds = array<i64: 1, 112>}, {transform_indices = @transform_3, window_bounds = array<i64: 1, 112>}]} {
    %c0 = arith.constant 0 : index
    %c0_0 = arith.constant 0 : index
    %0 = vector.load %arg1[%c0, %c0_0] : memref<1x8xf32, #tpu.memory_space<vmem>>, vector<1x8xf32>
    %cst = arith.constant 0.000000e+00 : f32
    %1 = vector.broadcast %cst : f32 to vector<1x8xf32>
    %2 = arith.maximumf %0, %1 : vector<1x8xf32>
    %c0_1 = arith.constant 0 : index
    %c0_2 = arith.constant 0 : index
    %3 = vector.load %arg2[%c0_1, %c0_2] : memref<8x112xf32, #tpu.memory_space<vmem>>, vector<8x112xf32>
    %cst_3 = arith.constant dense<0.000000e+00> : vector<1x112xf32>
    %4 = tpu.matmul %2, %3, %cst_3 {dimension_numbers = #tpu.dot_dimension_numbers<[1], [0], [0], [1], [0, 0, 1, 1], [], []>} : vector<1x8xf32>, vector<8x112xf32>, vector<1x112xf32> -> vector<1x112xf32>
    %c0_4 = arith.constant 0 : index
    %c0_5 = arith.constant 0 : index
    %5 = vector.load %arg3[%c0_4, %c0_5] : memref<1x112xf32, #tpu.memory_space<vmem>>, vector<1x112xf32>
    %6 = arith.addf %4, %5 : vector<1x112xf32>
    %c0_6 = arith.constant 0 : index
    %c0_7 = arith.constant 0 : index
    %7 = vector.load %arg4[%c0_6, %c0_7] : memref<1x112xf32, #tpu.memory_space<vmem>>, vector<1x112xf32>
    tpu.vector_store %arg4[%c0_6, %c0_7], %6 {strides = array<i32>} : memref<1x112xf32, #tpu.memory_space<vmem>>, vector<1x112xf32>,
    return
  }
  func.func @transform_0(%arg0: i32) -> (i32, i32) {
    %c0_i32 = arith.constant 0 : i32
    %c0_i32_0 = arith.constant 0 : i32
    return %arg0, %c0_i32 : i32, i32
  }
  func.func @transform_1(%arg0: i32) -> (i32, i32) {
    %c0_i32 = arith.constant 0 : i32
    %c0_i32_0 = arith.constant 0 : i32
    %c0_i32_1 = arith.constant 0 : i32
    return %c0_i32, %c0_i32_0 : i32, i32
  }
  func.func @transform_2(%arg0: i32) -> (i32, i32) {
    %c0_i32 = arith.constant 0 : i32
    %c0_i32_0 = arith.constant 0 : i32
    %c0_i32_1 = arith.constant 0 : i32
    return %c0_i32, %c0_i32_0 : i32, i32
  }
  func.func @transform_3(%arg0: i32) -> (i32, i32) {
    %c0_i32 = arith.constant 0 : i32
    %c0_i32_0 = arith.constant 0 : i32
    return %arg0, %c0_i32 : i32, i32
  }
}

</mosaic_0001>

<llo_original>
// kernel: tpu_custom_call.1
$region0: #{tpu_custom_call.1}
  #allocation0 [shape = 'u32[]', space=smem, size = 0x4, offset = 0x4, fixed_abs, tag = 'smem constant byte address 0x4 - core index']
  #allocation1 [shape = 'u32[72,128]{1,0:T(1,128)}', space=vmem, size = 0x9000, scoped, tag = 'internal scratch']
  %s0 = inlined_call_operand.hbm [shape: f32[1,8], index: 0, kind: input, shape index: {}]
  %s1 = inlined_call_operand.hbm [shape: f32[8,112], index: 1, kind: input, shape index: {}]
  %s2 = inlined_call_operand.vmem [shape: f32[1,112], index: 2, kind: input, shape index: {}]
  %s3 = inlined_call_operand.hbm [shape: f32[1,112], index: 3, kind: output, shape index: {}]
  %s4 = sld [smem:[#allocation0]]
  $region30: #{tpu_custom_call.1} parent=0
    _
  %s6 = ssub.s32 1, %s4
  %s7 = scalar_select 0, %s6, %s4
  $region1: #{tpu_custom_call.1} parent=0
    #allocation2 [shape = 'u8[512]{0}', space=vmem, size = 0x400, scoped, tag = 'input window, operand 0, single buffered']
    #allocation3 [shape = 's32[1]{0}', space=sflag, size = 0x4, scoped, tag = 'scoped memory for tpu_custom_call.1']
    #allocation4 [shape = 's32[1]{0}', space=sflag, size = 0x4, scoped, tag = 'scoped memory for tpu_custom_call.1']
    #allocation5 [shape = 'u8[4096]{0}', space=vmem, size = 0x1000, scoped, tag = 'input window, operand 1, single buffered']
    #allocation6 [shape = 's32[1]{0}', space=sflag, size = 0x4, scoped, tag = 'scoped memory for tpu_custom_call.1']
    #allocation7 [shape = 'u8[512]{0}', space=vmem, size = 0x400, scoped, tag = 'output window, operand 0, single buffered']
    %8 = vsyncpa [#allocation3], 0
    %9 = vsyncpa [#allocation6], 0
    %10 = vsyncpa [#allocation4], 0
    // Predicated region
    $region2: #{tpu_custom_call.1} parent=1 // pred_check
      _
    $region3: #{tpu_custom_call.1} parent=1 // pred_check_branch
      %12 = sbr.rel (0) target = $region5
    $region4: #{tpu_custom_call.1} parent=1 // pred_region
      %14 = vsyncadd [#allocation3], 0
      %s16 = sshll.u32 %s0, 4
      %s17 = int_to_ptr.hbm [resolvable:$true] %s16
      %s18 = sshll.u32 [#allocation2], 4
      %s19 = int_to_ptr.vmem [resolvable:$true] %s18
      %21 = dma.hbm_to_vmem [thread:$0]  %s17, 16, %s19, [#allocation3]
    $region5: #{tpu_custom_call.1} parent=1 // pred_fallthru
      _
    // Predicated region
    $region6: #{tpu_custom_call.1} parent=1 // pred_check
      _
    $region7: #{tpu_custom_call.1} parent=1 // pred_check_branch
      %23 = sbr.rel (0) target = $region9
    $region8: #{tpu_custom_call.1} parent=1 // pred_region
      %25 = vsyncadd [#allocation6], 0
      %s27 = sshll.u32 %s1, 4
      %s28 = int_to_ptr.hbm [resolvable:$true] %s27
      %s29 = sshll.u32 [#allocation5], 4
      %s30 = int_to_ptr.vmem [resolvable:$true] %s29
      %32 = dma.hbm_to_vmem [thread:$0]  %s28, 128, %s30, [#allocation6]
    $region9: #{tpu_custom_call.1} parent=1 // pred_fallthru
      _
    // Predicated region
    $region10: #{tpu_custom_call.1} parent=1 // pred_check
      _
    $region11: #{tpu_custom_call.1} parent=1 // pred_check_branch
      %34 = sbr.rel (0) target = $region13
    $region12: #{tpu_custom_call.1} parent=1 // pred_region
      _
    $region13: #{tpu_custom_call.1} parent=1 // pred_fallthru
      _
    // Predicated region
    $region14: #{tpu_custom_call.1} parent=1 // pred_check
      _
    $region15: #{tpu_custom_call.1} parent=1 // pred_check_branch
      %36 = sbr.rel (0) target = $region17
    $region16: #{tpu_custom_call.1} parent=1 // pred_region
      %38 = dma.done [#allocation3], 16
    $region17: #{tpu_custom_call.1} parent=1 // pred_fallthru
      _
    // Predicated region
    $region18: #{tpu_custom_call.1} parent=1 // pred_check
      _
    $region19: #{tpu_custom_call.1} parent=1 // pred_check_branch
      %40 = sbr.rel (0) target = $region21
    $region20: #{tpu_custom_call.1} parent=1 // pred_region
      %42 = dma.done [#allocation6], 128
    $region21: #{tpu_custom_call.1} parent=1 // pred_fallthru
      _
    %v43 = vld [vmem:[#allocation2] sm:$0x1]
    %v44 = vmax.f32 %v43, 0.0
    %v45 = vld [vmem:[#allocation5] sm:$0xff]
    %v46 = vld [vmem:[%s2] sm:$0x1]
    %vm47 = vcmask 64512
    %v49 = vsel %vm47, %v44, 0
    %51 = vmatpush.msra.mxu0 0.0
    %52 = vmatpush.msra.mxu0 0.0
    %53 = vmatpush.msra.mxu0 0.0
    %54 = vmatpush.msra.mxu0 0.0
    %55 = vmatpush.msra.mxu0 0.0
    %56 = vmatpush.msra.mxu0 0.0
    %57 = vmatpush.msra.mxu0 0.0
    %58 = vmatpush.msra.mxu0 0.0
    %59 = vmatpush.msra.mxu0 0.0
    %60 = vmatpush.msra.mxu0 0.0
    %61 = vmatpush.msra.mxu0 0.0
    %62 = vmatpush.msra.mxu0 0.0
    %63 = vmatpush.msra.mxu0 0.0
    %64 = vmatpush.msra.mxu0 0.0
    %65 = vmatpush.msra.mxu0 0.0
    %66 = vmatpush.msra.mxu0 %v45
    %67 = vmatmul.f32.gmra.mxu0 %v49
    %v68 = vpop.f32.mrf.mxu0
    %v69 = vadd.f32 %v46, %v68
    %70 = vdwg.mxu0
    %vm71 = vcmask 909312
    %72 = vst.msk [vmem:[#allocation7] sm:$0x1] %vm71, %v69
    // Predicated region
    $region22: #{tpu_custom_call.1} parent=1 // pred_check
      _
    $region23: #{tpu_custom_call.1} parent=1 // pred_check_branch
      %74 = sbr.rel (0) target = $region25
    $region24: #{tpu_custom_call.1} parent=1 // pred_region
      %76 = vsyncadd [#allocation4], 0
      %s78 = sshll.u32 [#allocation7], 4
      %s79 = int_to_ptr.vmem [resolvable:$true] %s78
      %s80 = sshll.u32 %s3, 4
      %s81 = int_to_ptr.hbm [resolvable:$true] %s80
      %83 = dma.vmem_to_hbm [thread:$0]  %s79, 16, %s81, [#allocation4]
    $region25: #{tpu_custom_call.1} parent=1 // pred_fallthru
      _
    // Predicated region
    $region26: #{tpu_custom_call.1} parent=1 // pred_check
      _
    $region27: #{tpu_custom_call.1} parent=1 // pred_check_branch
      %85 = sbr.rel (0) target = $region29
    $region28: #{tpu_custom_call.1} parent=1 // pred_region
      %87 = dma.done [#allocation4], 16
    $region29: #{tpu_custom_call.1} parent=1 // pred_fallthru
      _
    %88 = vsyncpa [#allocation3], 1
    %89 = vsyncpa [#allocation6], 1
    %90 = vsyncpa [#allocation4], 1

</llo_original>
